<compile_context>
chip_gen: v5e
topology: v5e:2x2
jax: 0.10.0
libtpu: 0.0.40
codegen_flags: <defaults>
</compile_context>

<pallas_src>
import functools
import math

import jax
import jax.numpy as jnp
from jax.experimental import pallas as pl
from jax.experimental.pallas import tpu as pltpu


def _round_up(n, m):
    return ((n + m - 1) // m) * m


# ---------------------------------------------------------------------------
# Kernels
# ---------------------------------------------------------------------------
def _mlp_body(x_ref, w1_ref, b1_ref, w2_ref, b2_ref, o_ref, drop_ref=None,
              drop_scale=1.0):
    # layer1: Linear(in -> hidden); native-dtype inputs, f32 accumulation (MXU).
    h = jnp.dot(x_ref[...], w1_ref[...], preferred_element_type=jnp.float32)
    h = h + b1_ref[...]                       # (1, H_pad) f32 broadcast (VPU)

    # layer2: SiLU = x * sigmoid(x)  (sigmoid runs on the EUP slot)
    h = h * jax.nn.sigmoid(h)

    # layer3: Dropout (train only): select(keep, h * 1/(1-p), 0), scale hoisted.
    if drop_ref is not None:
        h = jnp.where(drop_ref[...] != 0, h * drop_scale, 0.0)

    # layer4: Linear(hidden -> out); cast back to weight dtype before the MXU.
    out = jnp.dot(h.astype(w2_ref.dtype), w2_ref[...],
                  preferred_element_type=jnp.float32)
    out = out + b2_ref[...]
    o_ref[...] = out.astype(o_ref.dtype)


def _mlp_eval_kernel(x_ref, w1_ref, b1_ref, w2_ref, b2_ref, o_ref):
    _mlp_body(x_ref, w1_ref, b1_ref, w2_ref, b2_ref, o_ref)


def _mlp_train_kernel(drop_scale, x_ref, w1_ref, b1_ref, w2_ref, b2_ref,
                      drop_ref, o_ref):
    _mlp_body(x_ref, w1_ref, b1_ref, w2_ref, b2_ref, o_ref,
              drop_ref=drop_ref, drop_scale=drop_scale)


# ---------------------------------------------------------------------------
# Wrapper helpers
# ---------------------------------------------------------------------------
def _resident_spec(block_shape, index_map):
    """Constant-index weights/biases: request single (non-double) buffering so
    they are resident once in VMEM.  Falls back gracefully if the installed JAX
    BlockSpec has no pipeline_mode kwarg."""
    if hasattr(pl, "Buffered"):
        try:
            return pl.BlockSpec(block_shape, index_map,
                                pipeline_mode=pl.Buffered(buffer_count=1))
        except TypeError:
            pass
    return pl.BlockSpec(block_shape, index_map)


def _auto_tile_m(tile_m, m, d_in, h_pad, d_out_pad, itemsize,
                 vmem_budget=40 * 1024 * 1024):
    """Pick the largest row tile <= tile_m that fits the VMEM budget
    (double-buffered x/mask/out tiles + resident weights + f32 hidden)."""
    tile = min(tile_m, _round_up(max(m, 1), 8))
    tile = _round_up(tile, 8)
    w_bytes = (d_in * h_pad + h_pad * d_out_pad) * itemsize \
        + (h_pad + d_out_pad) * 4
    while tile > 8:
        tile_bytes = (2 * tile * (d_in + h_pad + d_out_pad) * itemsize
                      + tile * h_pad * 4)          # f32 hidden intermediate
        if w_bytes + tile_bytes <= vmem_budget:
            break
        tile = _round_up(max(tile // 2, 8), 8)
    return tile


def prepare_params(params, compute_dtype=None):
    """One-time prep OUTSIDE the hot path: transpose PyTorch (out,in) weights to
    (in,out), pad hidden / output dims up to lane multiples of 128, and
    optionally cast the weights to a narrower compute dtype (bf16)."""
    w1, b1, w2, b2 = params
    hidden, d_in = w1.shape
    d_out = w2.shape[0]
    h_pad = _round_up(hidden, 128)
    d_out_pad = _round_up(d_out, 128)
    if compute_dtype is None:
        compute_dtype = w1.dtype
    w1t = jnp.pad(w1.T, ((0, 0), (0, h_pad - hidden))).astype(compute_dtype)
    w2t = jnp.pad(w2.T, ((0, h_pad - hidden),
                         (0, d_out_pad - d_out))).astype(compute_dtype)
    b1p = jnp.pad(b1, (0, h_pad - hidden)).astype(jnp.float32).reshape(1, h_pad)
    b2p = jnp.pad(b2, (0, d_out_pad - d_out)).astype(jnp.float32).reshape(1, d_out_pad)
    return dict(w1t=w1t, b1=b1p, w2t=w2t, b2=b2p,
                d_in=d_in, hidden=hidden, d_out=d_out,
                h_pad=h_pad, d_out_pad=d_out_pad,
                compute_dtype=jnp.dtype(compute_dtype))


def mlp_pallas(x, prep, dropout_rate=0.0, training=False, rng_key=None,
               tile_m=512):
    """x: (..., in_features). Returns (..., out_features)."""
    d_in, hidden, d_out = prep["d_in"], prep["hidden"], prep["d_out"]
    h_pad, d_out_pad = prep["h_pad"], prep["d_out_pad"]
    compute_dtype = prep["compute_dtype"]

    lead = x.shape[:-1]
    m = math.prod(lead) if lead else 1
    x2 = x.reshape(m, d_in)
    if x2.dtype != compute_dtype:
        x2 = x2.astype(compute_dtype)

    tile = _auto_tile_m(tile_m, m, d_in, h_pad, d_out_pad, compute_dtype.itemsize)
    m_pad = _round_up(m, tile)
    if m_pad != m:
        x2 = jnp.pad(x2, ((0, m_pad - m), (0, 0)))

    use_dropout = bool(training) and float(dropout_rate) > 0.0

    in_specs = [
        pl.BlockSpec((tile, d_in), lambda i: (i, 0)),          # x row tile
        _resident_spec((d_in, h_pad), lambda i: (0, 0)),       # w1 (resident)
        _resident_spec((1, h_pad), lambda i: (0, 0)),          # b1 (resident)
        _resident_spec((h_pad, d_out_pad), lambda i: (0, 0)),  # w2 (resident)
        _resident_spec((1, d_out_pad), lambda i: (0, 0)),      # b2 (resident)
    ]
    args = [x2, prep["w1t"], prep["b1"], prep["w2t"], prep["b2"]]

    if use_dropout:
        if rng_key is None:
            rng_key = jax.random.PRNGKey(0)
        # Keep-mask on the logical (m, hidden) shape -> reproducible across
        # tilings; padded rows/cols get mask 0 (their h is discarded anyway).
        keep = (jax.random.uniform(rng_key, (m, hidden))
                >= jnp.float32(dropout_rate)).astype(compute_dtype)
        keep = jnp.pad(keep, ((0, m_pad - m), (0, h_pad - hidden)))
        in_specs.append(pl.BlockSpec((tile, h_pad), lambda i: (i, 0)))
        args.append(keep)
        kernel = functools.partial(_mlp_train_kernel,
                                   float(1.0 / (1.0 - float(dropout_rate))))
    else:
        kernel = _mlp_eval_kernel

    out = pl.pallas_call(
        kernel,
        out_shape=jax.ShapeDtypeStruct((m_pad, d_out_pad), x.dtype),
        grid=(m_pad // tile,),
        in_specs=in_specs,
        out_specs=pl.BlockSpec((tile, d_out_pad), lambda i: (i, 0)),
        compiler_params=pltpu.CompilerParams(
            dimension_semantics=("parallel",),        # shard rows across TCs
            vmem_limit_bytes=64 * 1024 * 1024),
    )(*args)

    out = out[:m, :d_out]
    return out.reshape(*lead, d_out)


# ---------------------------------------------------------------------------
# Init + reference
# ---------------------------------------------------------------------------
def init_mlp_params(key, input_features, transformer_units):
    """Deterministic init mimicking nn.Linear's uniform(-1/sqrt(fan_in), +)."""
    h0, h1 = transformer_units
    k1, k2, k3, k4 = jax.random.split(key, 4)
    bnd1 = 1.0 / math.sqrt(input_features)
    bnd2 = 1.0 / math.sqrt(h0)
    w1 = jax.random.uniform(k1, (h0, input_features), jnp.float32, -bnd1, bnd1)
    b1 = jax.random.uniform(k2, (h0,), jnp.float32, -bnd1, bnd1)
    w2 = jax.random.uniform(k3, (h1, h0), jnp.float32, -bnd2, bnd2)
    b2 = jax.random.uniform(k4, (h1,), jnp.float32, -bnd2, bnd2)
    return w1, b1, w2, b2


def mlp_reference(x, params):
    """Pure-JAX reference (eval mode: dropout = identity)."""
    w1, b1, w2, b2 = params
    h = x @ w1.T + b1
    h = h * jax.nn.sigmoid(h)
    return h @ w2.T + b2


if __name__ == "__main__":
    batch, seq = 2, 8
    input_features = 32
    transformer_units = (64, 32)
    dropout_rate = 0.1

    key = jax.random.PRNGKey(0)
    kx, kp, kd = jax.random.split(key, 3)
    x = jax.random.normal(kx, (batch, seq, input_features), dtype=jnp.float32)
    params = init_mlp_params(kp, input_features, transformer_units)

    # One-time param preparation (transpose + lane padding), outside hot path.
    prep_f32 = prepare_params(params)                     # native f32 compute
    prep_bf16 = prepare_params(params, jnp.bfloat16)      # bf16 MXU compute

    # Eval-mode forward (dropout identity, matching model.eval()), f32 path.
    y = jax.block_until_ready(
        mlp_pallas(x, prep_f32, dropout_rate=dropout_rate, training=False))
    y_ref = mlp_reference(x, params)
    assert y.shape == (batch, seq, transformer_units[1])
    assert jnp.allclose(y, y_ref, atol=1e-5, rtol=1e-5)

    # bf16 compute path (f32 accumulation on the MXU) — loose tolerance.
    y_bf16 = jax.block_until_ready(
        mlp_pallas(x, prep_bf16, dropout_rate=dropout_rate, training=False))
    assert jnp.allclose(y_bf16.astype(jnp.float32), y_ref, atol=2e-1, rtol=2e-1)

    # Train-mode dropout path: deterministic given the same key, finite output.
    y_tr1 = jax.block_until_ready(
        mlp_pallas(x, prep_f32, dropout_rate=dropout_rate, training=True,
                   rng_key=kd))
    y_tr2 = jax.block_until_ready(
        mlp_pallas(x, prep_f32, dropout_rate=dropout_rate, training=True,
                   rng_key=kd))
    assert y_tr1.shape == y.shape
    assert bool(jnp.all(jnp.isfinite(y_tr1)))
    assert bool(jnp.array_equal(y_tr1, y_tr2))

    print("KERNEL_OK")
</pallas_src>

<mosaic_0001>
module attributes {stable_mosaic.version = 11 : i64} {
  func.func @_mlp_eval_kernel(%arg0: i32, %arg1: memref<16x32xf32, #tpu.memory_space<vmem>>, %arg2: memref<32x128xf32, #tpu.memory_space<vmem>>, %arg3: memref<1x128xf32, #tpu.memory_space<vmem>>, %arg4: memref<128x128xf32, #tpu.memory_space<vmem>>, %arg5: memref<1x128xf32, #tpu.memory_space<vmem>>, %arg6: memref<16x128xf32, #tpu.memory_space<vmem>>) attributes {dimension_semantics = [#tpu.dimension_semantics<parallel>], iteration_bounds = array<i64: 1>, scalar_prefetch = 0 : i64, scratch_operands = 0 : i64, tpu.core_type = #tpu.core_type<tc>, window_params = [{transform_indices = @transform_0, window_bounds = array<i64: 16, 32>}, {pipeline_mode = #tpu.pipeline_mode<synchronous>, transform_indices = @transform_1, window_bounds = array<i64: 32, 128>}, {pipeline_mode = #tpu.pipeline_mode<synchronous>, transform_indices = @transform_2, window_bounds = array<i64: 1, 128>}, {pipeline_mode = #tpu.pipeline_mode<synchronous>, transform_indices = @transform_3, window_bounds = array<i64: 128, 128>}, {pipeline_mode = #tpu.pipeline_mode<synchronous>, transform_indices = @transform_4, window_bounds = array<i64: 1, 128>}, {transform_indices = @transform_5, window_bounds = array<i64: 16, 128>}]} {
    %c0 = arith.constant 0 : index
    %c0_0 = arith.constant 0 : index
    %0 = vector.load %arg1[%c0, %c0_0] : memref<16x32xf32, #tpu.memory_space<vmem>>, vector<16x32xf32>
    %c0_1 = arith.constant 0 : index
    %c0_2 = arith.constant 0 : index
    %1 = vector.load %arg2[%c0_1, %c0_2] : memref<32x128xf32, #tpu.memory_space<vmem>>, vector<32x128xf32>
    %cst = arith.constant dense<0.000000e+00> : vector<16x128xf32>
    %2 = tpu.matmul %0, %1, %cst {dimension_numbers = #tpu.dot_dimension_numbers<[1], [0], [0], [1], [0, 0, 1, 1], [], []>} : vector<16x32xf32>, vector<32x128xf32>, vector<16x128xf32> -> vector<16x128xf32>
    %c0_3 = arith.constant 0 : index
    %c0_4 = arith.constant 0 : index
    %3 = vector.load %arg3[%c0_3, %c0_4] : memref<1x128xf32, #tpu.memory_space<vmem>>, vector<1x128xf32>
    %4 = vector.broadcast %3 : vector<1x128xf32> to vector<16x128xf32>
    %5 = arith.addf %2, %4 : vector<16x128xf32>
    %6 = arith.negf %5 : vector<16x128xf32>
    %7 = math.exp %6 : vector<16x128xf32>
    %cst_5 = arith.constant 1.000000e+00 : f32
    %8 = vector.broadcast %cst_5 : f32 to vector<16x128xf32>
    %9 = arith.addf %8, %7 : vector<16x128xf32>
    %10 = arith.divf %8, %9 : vector<16x128xf32>
    %11 = arith.mulf %5, %10 : vector<16x128xf32>
    %c0_6 = arith.constant 0 : index
    %c0_7 = arith.constant 0 : index
    %12 = vector.load %arg4[%c0_6, %c0_7] : memref<128x128xf32, #tpu.memory_space<vmem>>, vector<128x128xf32>
    %cst_8 = arith.constant dense<0.000000e+00> : vector<16x128xf32>
    %13 = tpu.matmul %11, %12, %cst_8 {dimension_numbers = #tpu.dot_dimension_numbers<[1], [0], [0], [1], [0, 0, 1, 1], [], []>} : vector<16x128xf32>, vector<128x128xf32>, vector<16x128xf32> -> vector<16x128xf32>
    %c0_9 = arith.constant 0 : index
    %c0_10 = arith.constant 0 : index
    %14 = vector.load %arg5[%c0_9, %c0_10] : memref<1x128xf32, #tpu.memory_space<vmem>>, vector<1x128xf32>
    %15 = vector.broadcast %14 : vector<1x128xf32> to vector<16x128xf32>
    %16 = arith.addf %13, %15 : vector<16x128xf32>
    %c0_11 = arith.constant 0 : index
    %c0_12 = arith.constant 0 : index
    %17 = vector.load %arg6[%c0_11, %c0_12] : memref<16x128xf32, #tpu.memory_space<vmem>>, vector<16x128xf32>
    tpu.vector_store %arg6[%c0_11, %c0_12], %16 {strides = array<i32>} : memref<16x128xf32, #tpu.memory_space<vmem>>, vector<16x128xf32>,
    return
  }
  func.func @transform_0(%arg0: i32) -> (i32, i32) {
    %c0_i32 = arith.constant 0 : i32
    %c0_i32_0 = arith.constant 0 : i32
    return %arg0, %c0_i32 : i32, i32
  }
  func.func @transform_1(%arg0: i32) -> (i32, i32) {
    %c0_i32 = arith.constant 0 : i32
    %c0_i32_0 = arith.constant 0 : i32
    %c0_i32_1 = arith.constant 0 : i32
    return %c0_i32, %c0_i32_0 : i32, i32
  }
  func.func @transform_2(%arg0: i32) -> (i32, i32) {
    %c0_i32 = arith.constant 0 : i32
    %c0_i32_0 = arith.constant 0 : i32
    %c0_i32_1 = arith.constant 0 : i32
    return %c0_i32, %c0_i32_0 : i32, i32
  }
  func.func @transform_3(%arg0: i32) -> (i32, i32) {
    %c0_i32 = arith.constant 0 : i32
    %c0_i32_0 = arith.constant 0 : i32
    %c0_i32_1 = arith.constant 0 : i32
    return %c0_i32, %c0_i32_0 : i32, i32
  }
  func.func @transform_4(%arg0: i32) -> (i32, i32) {
    %c0_i32 = arith.constant 0 : i32
    %c0_i32_0 = arith.constant 0 : i32
    %c0_i32_1 = arith.constant 0 : i32
    return %c0_i32, %c0_i32_0 : i32, i32
  }
  func.func @transform_5(%arg0: i32) -> (i32, i32) {
    %c0_i32 = arith.constant 0 : i32
    %c0_i32_0 = arith.constant 0 : i32
    return %arg0, %c0_i32 : i32, i32
  }
}

</mosaic_0001>

<llo_original>
// kernel: tpu_custom_call.1
$region0: #{tpu_custom_call.1}
  #allocation0 [shape = 'u32[]', space=smem, size = 0x4, offset = 0x4, fixed_abs, tag = 'smem constant byte address 0x4 - core index']
  #allocation1 [shape = 'u32[72,128]{1,0:T(1,128)}', space=vmem, size = 0x9000, scoped, tag = 'internal scratch']
  %s0 = inlined_call_operand.hbm [shape: f32[16,32], index: 0, kind: input, shape index: {}]
  %s1 = inlined_call_operand.hbm [shape: f32[32,128], index: 1, kind: input, shape index: {}]
  %s2 = inlined_call_operand.vmem [shape: f32[1,128], index: 2, kind: input, shape index: {}]
  %s3 = inlined_call_operand.hbm [shape: f32[128,128], index: 3, kind: input, shape index: {}]
  %s4 = inlined_call_operand.vmem [shape: f32[1,128], index: 4, kind: input, shape index: {}]
  %s5 = inlined_call_operand.hbm [shape: f32[16,128], index: 5, kind: output, shape index: {}]
  %s6 = sld [smem:[#allocation0]]
  $region42: #{tpu_custom_call.1} parent=0
    _
  %s8 = ssub.s32 1, %s6
  %s9 = scalar_select 0, %s8, %s6
  $region1: #{tpu_custom_call.1} parent=0
    #allocation2 [shape = 'u8[8192]{0}', space=vmem, size = 0x2000, scoped, tag = 'input window, operand 0, single buffered']
    #allocation3 [shape = 's32[1]{0}', space=sflag, size = 0x4, scoped, tag = 'scoped memory for tpu_custom_call.1']
    #allocation4 [shape = 's32[1]{0}', space=sflag, size = 0x4, scoped, tag = 'scoped memory for tpu_custom_call.1']
    #allocation5 [shape = 'u8[16384]{0}', space=vmem, size = 0x4000, scoped, tag = 'input window, operand 1, single buffered']
    #allocation6 [shape = 's32[1]{0}', space=sflag, size = 0x4, scoped, tag = 'scoped memory for tpu_custom_call.1']
    #allocation7 [shape = 'u8[65536]{0}', space=vmem, size = 0x10000, scoped, tag = 'input window, operand 3, single buffered']
    #allocation8 [shape = 'u8[8192]{0}', space=vmem, size = 0x2000, scoped, tag = 'output window, operand 0, single buffered']
    %10 = vsyncpa [#allocation3], 0
    %11 = vsyncpa [#allocation6], 0
    %12 = vsyncpa [#allocation4], 0
    // Predicated region
    $region2: #{tpu_custom_call.1} parent=1 // pred_check
      _
    $region3: #{tpu_custom_call.1} parent=1 // pred_check_branch
      %14 = sbr.rel (0) target = $region5
    $region4: #{tpu_custom_call.1} parent=1 // pred_region
      %16 = vsyncadd [#allocation3], 0
      %s17 = sshll.u32 %s0, 4
      %s18 = int_to_ptr.hbm [resolvable:$true] %s17
      %s19 = sshll.u32 [#allocation2], 4
      %s20 = int_to_ptr.vmem [resolvable:$true] %s19
      %25 = dma.hbm_to_vmem [thread:$0]  %s18, 256, %s20, [#allocation3], 128, 128, 8
    $region5: #{tpu_custom_call.1} parent=1 // pred_fallthru
      _
    // Predicated region
    $region6: #{tpu_custom_call.1} parent=1 // pred_check
      _
    $region7: #{tpu_custom_call.1} parent=1 // pred_check_branch
      %27 = sbr.rel (0) target = $region9
    $region8: #{tpu_custom_call.1} parent=1 // pred_region
      %29 = vsyncadd [#allocation6], 0
      %s30 = sshll.u32 %s1, 4
      %s31 = int_to_ptr.hbm [resolvable:$true] %s30
      %s32 = sshll.u32 [#allocation5], 4
      %s33 = int_to_ptr.vmem [resolvable:$true] %s32
      %38 = dma.hbm_to_vmem [thread:$0]  %s31, 512, %s33, [#allocation6], 128, 128, 8
    $region9: #{tpu_custom_call.1} parent=1 // pred_fallthru
      _
    // Predicated region
    $region10: #{tpu_custom_call.1} parent=1 // pred_check
      _
    $region11: #{tpu_custom_call.1} parent=1 // pred_check_branch
      %40 = sbr.rel (0) target = $region13
    $region12: #{tpu_custom_call.1} parent=1 // pred_region
      _
    $region13: #{tpu_custom_call.1} parent=1 // pred_fallthru
      _
    // Predicated region
    $region14: #{tpu_custom_call.1} parent=1 // pred_check
      _
    $region15: #{tpu_custom_call.1} parent=1 // pred_check_branch
      %42 = sbr.rel (0) target = $region17
    $region16: #{tpu_custom_call.1} parent=1 // pred_region
      %44 = vsyncadd [#allocation6], 0
      %s45 = sshll.u32 %s3, 4
      %s46 = int_to_ptr.hbm [resolvable:$true] %s45
      %s47 = sshll.u32 [#allocation7], 4
      %s48 = int_to_ptr.vmem [resolvable:$true] %s47
      %53 = dma.hbm_to_vmem [thread:$0]  %s46, 2048, %s48, [#allocation6], 128, 128, 8
    $region17: #{tpu_custom_call.1} parent=1 // pred_fallthru
      _
    // Predicated region
    $region18: #{tpu_custom_call.1} parent=1 // pred_check
      _
    $region19: #{tpu_custom_call.1} parent=1 // pred_check_branch
      %55 = sbr.rel (0) target = $region21
    $region20: #{tpu_custom_call.1} parent=1 // pred_region
      _
    $region21: #{tpu_custom_call.1} parent=1 // pred_fallthru
      _
    // Predicated region
    $region22: #{tpu_custom_call.1} parent=1 // pred_check
      _
    $region23: #{tpu_custom_call.1} parent=1 // pred_check_branch
      %57 = sbr.rel (0) target = $region25
    $region24: #{tpu_custom_call.1} parent=1 // pred_region
      %59 = dma.done [#allocation3], 256
    $region25: #{tpu_custom_call.1} parent=1 // pred_fallthru
      _
    // Predicated region
    $region26: #{tpu_custom_call.1} parent=1 // pred_check
      _
    $region27: #{tpu_custom_call.1} parent=1 // pred_check_branch
      %61 = sbr.rel (0) target = $region29
    $region28: #{tpu_custom_call.1} parent=1 // pred_region
      %63 = dma.done [#allocation6], 512
    $region29: #{tpu_custom_call.1} parent=1 // pred_fallthru
      _
    // Predicated region
    $region30: #{tpu_custom_call.1} parent=1 // pred_check
      _
    $region31: #{tpu_custom_call.1} parent=1 // pred_check_branch
      %65 = sbr.rel (0) target = $region33
    $region32: #{tpu_custom_call.1} parent=1 // pred_region
      %67 = dma.done [#allocation6], 2048
    $region33: #{tpu_custom_call.1} parent=1 // pred_fallthru
      _
    %v68 = vld [vmem:[#allocation2] sm:$0xff]
    %v69 = vld [vmem:[#allocation2 + $0x8] sm:$0xff]
    %v70 = vld [vmem:[#allocation5] sm:$0xff]
    %v71 = vld [vmem:[#allocation5 + $0x8] sm:$0xff]
    %v72 = vld [vmem:[#allocation5 + $0x10] sm:$0xff]
    %v73 = vld [vmem:[#allocation5 + $0x18] sm:$0xff]
    %v74 = vld [vmem:[%s2] sm:$0x1]
    %v76 = vperm.slane %v74, 0
    %vm78 = vcmask 261120
    %v80 = vsel %vm78, %v68, 0
    %v83 = vsel %vm78, %v69, 0
    %85 = vmatpush.msra.mxu0 0.0
    %86 = vmatpush.msra.mxu0 0.0
    %87 = vmatpush.msra.mxu0 0.0
    %88 = vmatpush.msra.mxu0 0.0
    %89 = vmatpush.msra.mxu0 0.0
    %90 = vmatpush.msra.mxu0 0.0
    %91 = vmatpush.msra.mxu0 0.0
    %92 = vmatpush.msra.mxu0 0.0
    %93 = vmatpush.msra.mxu0 0.0
    %94 = vmatpush.msra.mxu0 0.0
    %95 = vmatpush.msra.mxu0 0.0
    %96 = vmatpush.msra.mxu0 0.0
    %97 = vmatpush.msra.mxu0 %v73
    %98 = vmatpush.msra.mxu0 %v72
    %99 = vmatpush.msra.mxu0 %v71
    %100 = vmatpush.msra.mxu0 %v70
    %101 = vmatmul.f32.gmra.mxu0 %v80
    %v102 = vpop.f32.mrf.mxu0
    %v103 = vadd.f32 %v76, %v102
    %104 = vmatmul.f32.gmra.mxu0 %v83
    %v105 = vpop.f32.mrf.mxu0
    %v106 = vadd.f32 %v76, %v105
    %107 = vdwg.mxu0
    %v108 = vxor.u32 %v103, 2147483648
    %v109 = vxor.u32 %v106, 2147483648
    %v110 = vmul.f32 %v108, 1.442695
    %v111 = vpow.pop %v110
    %v112 = vmul.f32 %v109, 1.442695
    %v113 = vpow.pop %v112
    %v114 = vadd.f32 %v111, 1.0
    %v115 = vadd.f32 %v113, 1.0
    %v116 = vrcp.pop %v114
    %v117 = vmul.f32 %v114, %v116
    %v118 = vsub.f32 1.0, %v117
    %v119 = vmul.f32 %v116, %v118
    %v120 = vadd.f32 %v116, %v119
    %vm121 = vweird.f32 %v114
    %vm122 = vweird.f32 %v116
    %vm123 = vmor %vm121, %vm122
    %v124 = vsel %vm123, %v116, %v120
    %v125 = vand.u32 2147483647, %v114
    %vm126 = vcmp.eq.f32.partialorder %v125, 8.507059e+37
    %v127 = vand.u32 %v114, 2147483648
    %v128 = vor.u32 1.1754944e-38, %v127
    %v129 = vsel %vm126, %v128, %v124
    %v130 = vmul.f32 1.0, %v129
    %v131 = vrcp.pop %v115
    %v132 = vmul.f32 %v115, %v131
    %v133 = vsub.f32 1.0, %v132
    %v134 = vmul.f32 %v131, %v133
    %v135 = vadd.f32 %v131, %v134
    %vm136 = vweird.f32 %v115
    %vm137 = vweird.f32 %v131
    %vm138 = vmor %vm136, %vm137
    %v139 = vsel %vm138, %v131, %v135
    %v140 = vand.u32 2147483647, %v115
    %vm141 = vcmp.eq.f32.partialorder %v140, 8.507059e+37
    %v142 = vand.u32 %v115, 2147483648
    %v143 = vor.u32 1.1754944e-38, %v142
    %v144 = vsel %vm141, %v143, %v139
    %v145 = vmul.f32 1.0, %v144
    %v146 = vmul.f32 %v103, %v130
    %v147 = vmul.f32 %v106, %v145
    %v148 = vld [vmem:[#allocation7] sm:$0xff]
    %v149 = vld [vmem:[#allocation7 + $0x8] sm:$0xff]
    %v150 = vld [vmem:[#allocation7 + $0x10] sm:$0xff]
    %v151 = vld [vmem:[#allocation7 + $0x18] sm:$0xff]
    %v152 = vld [vmem:[#allocation7 + $0x20] sm:$0xff]
    %v153 = vld [vmem:[#allocation7 + $0x28] sm:$0xff]
    %v154 = vld [vmem:[#allocation7 + $0x30] sm:$0xff]
    %v155 = vld [vmem:[#allocation7 + $0x38] sm:$0xff]
    %v156 = vld [vmem:[#allocation7 + $0x40] sm:$0xff]
    %v157 = vld [vmem:[#allocation7 + $0x48] sm:$0xff]
    %v158 = vld [vmem:[#allocation7 + $0x50] sm:$0xff]
    %v159 = vld [vmem:[#allocation7 + $0x58] sm:$0xff]
    %v160 = vld [vmem:[#allocation7 + $0x60] sm:$0xff]
    %v161 = vld [vmem:[#allocation7 + $0x68] sm:$0xff]
    %v162 = vld [vmem:[#allocation7 + $0x70] sm:$0xff]
    %v163 = vld [vmem:[#allocation7 + $0x78] sm:$0xff]
    %v164 = vld [vmem:[%s4] sm:$0x1]
    %v166 = vperm.slane %v164, 0
    %168 = vmatpush.msra.mxu0 %v163
    %169 = vmatpush.msra.mxu0 %v162
    %170 = vmatpush.msra.mxu0 %v161
    %171 = vmatpush.msra.mxu0 %v160
    %172 = vmatpush.msra.mxu0 %v159
    %173 = vmatpush.msra.mxu0 %v158
    %174 = vmatpush.msra.mxu0 %v157
    %175 = vmatpush.msra.mxu0 %v156
    %176 = vmatpush.msra.mxu0 %v155
    %177 = vmatpush.msra.mxu0 %v154
    %178 = vmatpush.msra.mxu0 %v153
    %179 = vmatpush.msra.mxu0 %v152
    %180 = vmatpush.msra.mxu0 %v151
    %181 = vmatpush.msra.mxu0 %v150
    %182 = vmatpush.msra.mxu0 %v149
    %183 = vmatpush.msra.mxu0 %v148
    %184 = vmatmul.f32.gmra.mxu0 %v146
    %v185 = vpop.f32.mrf.mxu0
    %v186 = vadd.f32 %v166, %v185
    %187 = vmatmul.f32.gmra.mxu0 %v147
    %v188 = vpop.f32.mrf.mxu0
    %v189 = vadd.f32 %v166, %v188
    %190 = vdwg.mxu0
    %191 = vst [vmem:[#allocation8] sm:$0xff] %v186
    %192 = vst [vmem:[#allocation8 + $0x8] sm:$0xff] %v189
    // Predicated region
    $region34: #{tpu_custom_call.1} parent=1 // pred_check
      _
    $region35: #{tpu_custom_call.1} parent=1 // pred_check_branch
      %194 = sbr.rel (0) target = $region37
    $region36: #{tpu_custom_call.1} parent=1 // pred_region
      %196 = vsyncadd [#allocation4], 0
      %s197 = sshll.u32 [#allocation8], 4
      %s198 = int_to_ptr.vmem [resolvable:$true] %s197
      %s199 = sshll.u32 %s5, 4
      %s200 = int_to_ptr.hbm [resolvable:$true] %s199
      %205 = dma.vmem_to_hbm [thread:$0]  %s198, 256, %s200, [#allocation4], 128, 128, 8
    $region37: #{tpu_custom_call.1} parent=1 // pred_fallthru
      _
    // Predicated region
    $region38: #{tpu_custom_call.1} parent=1 // pred_check
      _
    $region39: #{tpu_custom_call.1} parent=1 // pred_check_branch
      %207 = sbr.rel (0) target = $region41
    $region40: #{tpu_custom_call.1} parent=1 // pred_region
      %209 = dma.done [#allocation4], 256
    $region41: #{tpu_custom_call.1} parent=1 // pred_fallthru
      _
    %210 = vsyncpa [#allocation3], 1
    %211 = vsyncpa [#allocation6], 1
    %212 = vsyncpa [#allocation4], 1

</llo_original>
